<compile_context>
chip_gen: v6e
topology: v6e:2x2x1
jax: 0.10.0
libtpu: 0.0.40
codegen_flags: <defaults>
</compile_context>

<pallas_src>
import functools

import jax
import jax.numpy as jnp
from jax import lax
from jax.experimental import pallas as pl
from jax.experimental.pallas import tpu as pltpu


def _trilinear_kernel(grid_ref, vol_ref, out_ref, *, limit, c, vy, vx, vz):
    g = grid_ref[...]                     # (3, TQ) f32 : rows = (ix, iy, iz)
    ix = g[0:1, :]                        # (1, TQ) — queries on the lane axis
    iy = g[1:2, :]
    iz = g[2:3, :]

    px0, px1 = jnp.floor(ix), jnp.ceil(ix)
    py0, py1 = jnp.floor(iy), jnp.ceil(iy)
    pz0, pz1 = jnp.floor(iz), jnp.ceil(iz)
    dx = ix - px0
    dy = iy - py0
    dz = iz - pz0

    mod = jnp.float32(limit - 1)

    def wrap(v):
        # python/torch-style float modulo (% (limit-1)); inputs are exact
        # integers (floor/ceil results) so this is exact, but guard the
        # m == mod rounding edge anyway before casting to int.
        m = v - jnp.floor(v / mod) * mod
        m = jnp.where(m >= mod, m - mod, m)
        return m.astype(jnp.int32)

    x0, x1 = wrap(px0), wrap(px1)
    y0, y1 = wrap(py0), wrap(py1)
    z0, z1 = wrap(pz0), wrap(pz1)

    tq = g.shape[1]

    # ---- stage 1: xz gather weights as an outer product of 1-D one-hots ----
    # Wxz[x*Vz + z, q] = wx[x, q] * wz[z, q]; only O((Vx+Vz)*TQ) compares plus
    # one multiply per (Vx*Vz, TQ) element — no big iota, no 4-pass accumulate.
    rows_x = lax.broadcasted_iota(jnp.int32, (vx, tq), 0)
    wx = (jnp.where(rows_x == x0, 1.0 - dx, 0.0)
          + jnp.where(rows_x == x1, dx, 0.0))             # (Vx, TQ)
    rows_z = lax.broadcasted_iota(jnp.int32, (vz, tq), 0)
    wz = (jnp.where(rows_z == z0, 1.0 - dz, 0.0)
          + jnp.where(rows_z == z1, dz, 0.0))             # (Vz, TQ)
    wxz = (wx.reshape(vx, 1, tq) * wz.reshape(1, vz, tq)).reshape(vx * vz, tq)

    # vol_ref is (C*Vy, Vx*Vz): one matmul gathers+blends the xz corners for
    # every (channel, y) plane at once -> (C*Vy, TQ).
    # NOTE: HIGHEST kept on purpose — it is the verified setting vs the 1e-4
    # tolerance and the MXU is far from the bottleneck at supported sizes.
    m = jnp.dot(vol_ref[...], wxz,
                preferred_element_type=jnp.float32,
                precision=lax.Precision.HIGHEST)          # (C*Vy, TQ)

    # ---- stage 2: tiny y-contraction (one-hot built once at (Vy, TQ)) ----
    rows_y = lax.broadcasted_iota(jnp.int32, (vy, tq), 0)
    wy = (jnp.where(rows_y == y0, 1.0 - dy, 0.0)
          + jnp.where(rows_y == y1, dy, 0.0))             # (Vy, TQ)
    # Vy is sublane-aligned (multiple of 8 at supported sizes) so the reshape is
    # layout-preserving; wy broadcasts over the channel axis for free.
    prod = m.reshape(c, vy, tq) * wy.reshape(1, vy, tq)   # (C, Vy, TQ)
    out_ref[...] = jnp.sum(prod, axis=1)                  # (C, TQ), lane-dense


def slice_extractor_forward(volume, grid, *, limit, batch_size):
    """Pallas equivalent of SliceExctractor.forward (boundary_mode='periodic').

    volume: (1, 2, Vy, Vx, Vz) float32   (the torch repeat over batch is an
            indexing no-op: every batch reads the same data)
    grid:   (B, L, L, 3) float32, last dim = (ix, iy, iz)
    returns (B, 2, L, L) float32
    """
    B, L = batch_size, limit
    assert grid.shape == (B, L, L, 3)
    assert volume.shape[0] == 1
    _, C, Vy, Vx, Vz = volume.shape
    # periodic wrap is modulo (limit-1); indices stay in-bounds iff dims cover it
    assert limit - 1 <= min(Vy, Vx, Vz)
    nq = B * L * L
    nxz = Vx * Vz

    # Dense one-hot gather + matmul is O(Nq * Vx*Vz); keep it to volumes whose
    # Wxz tile stays small on every generation (v7x's 64 MiB VMEM is tightest).
    # TODO(synk): beyond this threshold, use a manual double-buffered DMA
    #             row-gather (memory_space=pl.ANY + pltpu.make_async_copy).
    assert nxz <= 4096, "dense one-hot path only supports Vx*Vz <= 4096"

    # (C*Vy, Vx*Vz): row = c*Vy + y, col = x*Vz + z   (plain reshape, no copy)
    vol_r = volume[0].reshape(C * Vy, nxz).astype(jnp.float32)
    # (3, Nq): queries on the lane axis
    grid_t = jnp.transpose(grid.reshape(nq, 3).astype(jnp.float32))

    # ---- adaptive, lane-dense query tile ----
    # Per-query-column f32 temporaries: Wxz (nxz) + m/prod (2*C*Vy) + wx/wz/wy.
    per_q_bytes = 4 * (nxz + 2 * C * Vy + Vx + Vy + Vz)
    tq = (8 << 20) // per_q_bytes // 128 * 128            # ~8 MiB temp budget
    tq = max(128, min(tq, 2048))
    # Keep >= 2 grid steps whenever Nq allows so ("parallel",) can shard across
    # v7x's two TensorCores (and the query/out pipeline actually overlaps).
    half = ((nq + 1) // 2 + 127) // 128 * 128
    tq = max(128, min(tq, half))
    nq_pad = pl.cdiv(nq, tq) * tq
    if nq_pad != nq:
        grid_t = jnp.pad(grid_t, ((0, 0), (0, nq_pad - nq)))
    num_steps = nq_pad // tq

    # Explicit VMEM budget (v5e's scoped default is only 16 MiB): resident
    # volume block (x2 for the default double-buffering — <= 512 KiB under the
    # nxz threshold), double-buffered query/out blocks, in-kernel temporaries,
    # 2x headroom; clamped to [32 MiB, 48 MiB] which is safe on v5e/v6e/v7x.
    vol_bytes = C * Vy * nxz * 4
    work_bytes = 2 * vol_bytes + 2 * (3 + C) * tq * 4 + per_q_bytes * tq
    vmem_limit = int(min(48 << 20, max(32 << 20, 2 * work_bytes)))

    kernel = functools.partial(
        _trilinear_kernel, limit=limit, c=C, vy=Vy, vx=Vx, vz=Vz)

    cost = pl.CostEstimate(
        flops=2 * C * Vy * nxz * nq_pad + 32 * nq_pad,
        transcendentals=0,
        bytes_accessed=num_steps * vol_bytes + (3 + C) * nq_pad * 4)

    out = pl.pallas_call(
        kernel,
        out_shape=jax.ShapeDtypeStruct((C, nq_pad), jnp.float32),
        grid=(num_steps,),
        in_specs=[
            pl.BlockSpec((3, tq), lambda i: (0, i)),          # query coords
            pl.BlockSpec((C * Vy, nxz), lambda i: (0, 0)),    # whole volume, resident
        ],
        out_specs=pl.BlockSpec((C, tq), lambda i: (0, i)),
        compiler_params=pltpu.CompilerParams(
            dimension_semantics=("parallel",),
            vmem_limit_bytes=vmem_limit),
        cost_estimate=cost,
    )(grid_t, vol_r)

    out = out[:, :nq]                                  # drop query padding
    return jnp.transpose(out.reshape(C, B, L, L), (1, 0, 2, 3))


def reference_forward(volume, grid, *, limit, batch_size):
    """Plain-JAX re-implementation of the torch forward for validation."""
    vol = volume[0]                          # (2, Vy, Vx, Vz); same for all batches
    ix, iy, iz = grid[..., 0], grid[..., 1], grid[..., 2]
    px0, px1 = jnp.floor(ix), jnp.ceil(ix)
    py0, py1 = jnp.floor(iy), jnp.ceil(iy)
    pz0, pz1 = jnp.floor(iz), jnp.ceil(iz)
    dx = (ix - px0)[:, None]
    dy = (iy - py0)[:, None]
    dz = (iz - pz0)[:, None]
    m = limit - 1

    def get(py, px, pz):
        yi = jnp.mod(py, m).astype(jnp.int32)
        xi = jnp.mod(px, m).astype(jnp.int32)
        zi = jnp.mod(pz, m).astype(jnp.int32)
        return jnp.transpose(vol[:, yi, xi, zi], (1, 0, 2, 3))  # (B, 2, L, L)

    c000, c100 = get(py0, px0, pz0), get(py0, px1, pz0)
    c00 = c000 * (1 - dx) + c100 * dx
    c010, c110 = get(py1, px0, pz0), get(py1, px1, pz0)
    c10 = c010 * (1 - dx) + c110 * dx
    c0 = c00 * (1 - dy) + c10 * dy
    c001, c101 = get(py0, px0, pz1), get(py0, px1, pz1)
    c01 = c001 * (1 - dx) + c101 * dx
    c011, c111 = get(py1, px0, pz1), get(py1, px1, pz1)
    c11 = c011 * (1 - dx) + c111 * dx
    c1 = c01 * (1 - dy) + c11 * dy
    return c0 * (1 - dz) + c1 * dz


if __name__ == "__main__":
    limit, batch_size = 8, 2

    key = jax.random.PRNGKey(0)
    kv, kg = jax.random.split(key)
    # volume: one "image" with 2 channels over an (L, L, L) lattice
    volume = jax.random.normal(kv, (1, 2, limit, limit, limit), dtype=jnp.float32)
    # grid coordinates (float), partly outside the lattice to exercise periodic wrap
    grid = jax.random.uniform(kg, (batch_size, limit, limit, 3),
                              minval=-2.0, maxval=float(limit) + 2.0,
                              dtype=jnp.float32)

    out = slice_extractor_forward(volume, grid, limit=limit, batch_size=batch_size)
    out = jax.block_until_ready(out)

    ref = reference_forward(volume, grid, limit=limit, batch_size=batch_size)
    assert out.shape == (batch_size, 2, limit, limit), out.shape
    assert jnp.allclose(out, ref, atol=1e-4, rtol=1e-4), float(
        jnp.max(jnp.abs(out - ref)))
    print("KERNEL_OK")
</pallas_src>

<mosaic_0001>
module attributes {stable_mosaic.version = 11 : i64} {
  func.func @_trilinear_kernel(%arg0: i32, %arg1: memref<3x128xf32, #tpu.memory_space<vmem>>, %arg2: memref<16x64xf32, #tpu.memory_space<vmem>>, %arg3: memref<2x128xf32, #tpu.memory_space<vmem>>) attributes {dimension_semantics = [#tpu.dimension_semantics<parallel>], iteration_bounds = array<i64: 1>, scalar_prefetch = 0 : i64, scratch_operands = 0 : i64, tpu.core_type = #tpu.core_type<tc>, window_params = [{transform_indices = @transform_0, window_bounds = array<i64: 3, 128>}, {pipeline_mode = #tpu.pipeline_mode<synchronous>, transform_indices = @transform_1, window_bounds = array<i64: 16, 64>}, {transform_indices = @transform_2, window_bounds = array<i64: 2, 128>}]} {
    %c0 = arith.constant 0 : index
    %c0_0 = arith.constant 0 : index
    %0 = vector.load %arg1[%c0, %c0_0] : memref<3x128xf32, #tpu.memory_space<vmem>>, vector<3x128xf32>
    %1 = vector.extract_strided_slice %0 {offsets = [0, 0], sizes = [1, 128], strides = [1, 1]} : vector<3x128xf32> to vector<1x128xf32>
    %2 = vector.extract_strided_slice %0 {offsets = [1, 0], sizes = [1, 128], strides = [1, 1]} : vector<3x128xf32> to vector<1x128xf32>
    %3 = vector.extract_strided_slice %0 {offsets = [2, 0], sizes = [1, 128], strides = [1, 1]} : vector<3x128xf32> to vector<1x128xf32>
    %4 = math.floor %1 : vector<1x128xf32>
    %5 = math.ceil %1 : vector<1x128xf32>
    %6 = math.floor %2 : vector<1x128xf32>
    %7 = math.ceil %2 : vector<1x128xf32>
    %8 = math.floor %3 : vector<1x128xf32>
    %9 = math.ceil %3 : vector<1x128xf32>
    %10 = arith.subf %1, %4 : vector<1x128xf32>
    %11 = arith.subf %2, %6 : vector<1x128xf32>
    %12 = arith.subf %3, %8 : vector<1x128xf32>
    %cst = arith.constant 7.000000e+00 : f32
    %13 = vector.broadcast %cst : f32 to vector<1x128xf32>
    %14 = arith.divf %4, %13 : vector<1x128xf32>
    %15 = math.floor %14 : vector<1x128xf32>
    %cst_1 = arith.constant 7.000000e+00 : f32
    %16 = vector.broadcast %cst_1 : f32 to vector<1x128xf32>
    %17 = arith.mulf %15, %16 : vector<1x128xf32>
    %18 = arith.subf %4, %17 : vector<1x128xf32>
    %cst_2 = arith.constant 7.000000e+00 : f32
    %19 = vector.broadcast %cst_2 : f32 to vector<1x128xf32>
    %20 = arith.cmpf oge, %18, %19 : vector<1x128xf32>
    %cst_3 = arith.constant 7.000000e+00 : f32
    %21 = vector.broadcast %cst_3 : f32 to vector<1x128xf32>
    %22 = arith.subf %18, %21 : vector<1x128xf32>
    %23 = arith.select %20, %22, %18 : vector<1x128xi1>, vector<1x128xf32>
    %24 = arith.fptosi %23 : vector<1x128xf32> to vector<1x128xi32>
    %cst_4 = arith.constant 7.000000e+00 : f32
    %25 = vector.broadcast %cst_4 : f32 to vector<1x128xf32>
    %26 = arith.divf %5, %25 : vector<1x128xf32>
    %27 = math.floor %26 : vector<1x128xf32>
    %cst_5 = arith.constant 7.000000e+00 : f32
    %28 = vector.broadcast %cst_5 : f32 to vector<1x128xf32>
    %29 = arith.mulf %27, %28 : vector<1x128xf32>
    %30 = arith.subf %5, %29 : vector<1x128xf32>
    %cst_6 = arith.constant 7.000000e+00 : f32
    %31 = vector.broadcast %cst_6 : f32 to vector<1x128xf32>
    %32 = arith.cmpf oge, %30, %31 : vector<1x128xf32>
    %cst_7 = arith.constant 7.000000e+00 : f32
    %33 = vector.broadcast %cst_7 : f32 to vector<1x128xf32>
    %34 = arith.subf %30, %33 : vector<1x128xf32>
    %35 = arith.select %32, %34, %30 : vector<1x128xi1>, vector<1x128xf32>
    %36 = arith.fptosi %35 : vector<1x128xf32> to vector<1x128xi32>
    %cst_8 = arith.constant 7.000000e+00 : f32
    %37 = vector.broadcast %cst_8 : f32 to vector<1x128xf32>
    %38 = arith.divf %6, %37 : vector<1x128xf32>
    %39 = math.floor %38 : vector<1x128xf32>
    %cst_9 = arith.constant 7.000000e+00 : f32
    %40 = vector.broadcast %cst_9 : f32 to vector<1x128xf32>
    %41 = arith.mulf %39, %40 : vector<1x128xf32>
    %42 = arith.subf %6, %41 : vector<1x128xf32>
    %cst_10 = arith.constant 7.000000e+00 : f32
    %43 = vector.broadcast %cst_10 : f32 to vector<1x128xf32>
    %44 = arith.cmpf oge, %42, %43 : vector<1x128xf32>
    %cst_11 = arith.constant 7.000000e+00 : f32
    %45 = vector.broadcast %cst_11 : f32 to vector<1x128xf32>
    %46 = arith.subf %42, %45 : vector<1x128xf32>
    %47 = arith.select %44, %46, %42 : vector<1x128xi1>, vector<1x128xf32>
    %48 = arith.fptosi %47 : vector<1x128xf32> to vector<1x128xi32>
    %cst_12 = arith.constant 7.000000e+00 : f32
    %49 = vector.broadcast %cst_12 : f32 to vector<1x128xf32>
    %50 = arith.divf %7, %49 : vector<1x128xf32>
    %51 = math.floor %50 : vector<1x128xf32>
    %cst_13 = arith.constant 7.000000e+00 : f32
    %52 = vector.broadcast %cst_13 : f32 to vector<1x128xf32>
    %53 = arith.mulf %51, %52 : vector<1x128xf32>
    %54 = arith.subf %7, %53 : vector<1x128xf32>
    %cst_14 = arith.constant 7.000000e+00 : f32
    %55 = vector.broadcast %cst_14 : f32 to vector<1x128xf32>
    %56 = arith.cmpf oge, %54, %55 : vector<1x128xf32>
    %cst_15 = arith.constant 7.000000e+00 : f32
    %57 = vector.broadcast %cst_15 : f32 to vector<1x128xf32>
    %58 = arith.subf %54, %57 : vector<1x128xf32>
    %59 = arith.select %56, %58, %54 : vector<1x128xi1>, vector<1x128xf32>
    %60 = arith.fptosi %59 : vector<1x128xf32> to vector<1x128xi32>
    %cst_16 = arith.constant 7.000000e+00 : f32
    %61 = vector.broadcast %cst_16 : f32 to vector<1x128xf32>
    %62 = arith.divf %8, %61 : vector<1x128xf32>
    %63 = math.floor %62 : vector<1x128xf32>
    %cst_17 = arith.constant 7.000000e+00 : f32
    %64 = vector.broadcast %cst_17 : f32 to vector<1x128xf32>
    %65 = arith.mulf %63, %64 : vector<1x128xf32>
    %66 = arith.subf %8, %65 : vector<1x128xf32>
    %cst_18 = arith.constant 7.000000e+00 : f32
    %67 = vector.broadcast %cst_18 : f32 to vector<1x128xf32>
    %68 = arith.cmpf oge, %66, %67 : vector<1x128xf32>
    %cst_19 = arith.constant 7.000000e+00 : f32
    %69 = vector.broadcast %cst_19 : f32 to vector<1x128xf32>
    %70 = arith.subf %66, %69 : vector<1x128xf32>
    %71 = arith.select %68, %70, %66 : vector<1x128xi1>, vector<1x128xf32>
    %72 = arith.fptosi %71 : vector<1x128xf32> to vector<1x128xi32>
    %cst_20 = arith.constant 7.000000e+00 : f32
    %73 = vector.broadcast %cst_20 : f32 to vector<1x128xf32>
    %74 = arith.divf %9, %73 : vector<1x128xf32>
    %75 = math.floor %74 : vector<1x128xf32>
    %cst_21 = arith.constant 7.000000e+00 : f32
    %76 = vector.broadcast %cst_21 : f32 to vector<1x128xf32>
    %77 = arith.mulf %75, %76 : vector<1x128xf32>
    %78 = arith.subf %9, %77 : vector<1x128xf32>
    %cst_22 = arith.constant 7.000000e+00 : f32
    %79 = vector.broadcast %cst_22 : f32 to vector<1x128xf32>
    %80 = arith.cmpf oge, %78, %79 : vector<1x128xf32>
    %cst_23 = arith.constant 7.000000e+00 : f32
    %81 = vector.broadcast %cst_23 : f32 to vector<1x128xf32>
    %82 = arith.subf %78, %81 : vector<1x128xf32>
    %83 = arith.select %80, %82, %78 : vector<1x128xi1>, vector<1x128xf32>
    %84 = arith.fptosi %83 : vector<1x128xf32> to vector<1x128xi32>
    %85 = tpu.iota {dimensions = array<i32: 0>} : vector<8x128xi32>
    %86 = vector.broadcast %24 : vector<1x128xi32> to vector<8x128xi32>
    %87 = arith.cmpi eq, %85, %86 : vector<8x128xi32>
    %cst_24 = arith.constant 1.000000e+00 : f32
    %88 = vector.broadcast %cst_24 : f32 to vector<1x128xf32>
    %89 = arith.subf %88, %10 : vector<1x128xf32>
    %cst_25 = arith.constant 0.000000e+00 : f32
    %90 = vector.shape_cast %89 : vector<1x128xf32> to vector<1x128xf32>
    %91 = vector.broadcast %90 : vector<1x128xf32> to vector<8x128xf32>
    %92 = vector.broadcast %cst_25 : f32 to vector<8x128xf32>
    %93 = arith.select %87, %91, %92 : vector<8x128xi1>, vector<8x128xf32>
    %94 = vector.broadcast %36 : vector<1x128xi32> to vector<8x128xi32>
    %95 = arith.cmpi eq, %85, %94 : vector<8x128xi32>
    %cst_26 = arith.constant 0.000000e+00 : f32
    %96 = vector.shape_cast %10 : vector<1x128xf32> to vector<1x128xf32>
    %97 = vector.broadcast %96 : vector<1x128xf32> to vector<8x128xf32>
    %98 = vector.broadcast %cst_26 : f32 to vector<8x128xf32>
    %99 = arith.select %95, %97, %98 : vector<8x128xi1>, vector<8x128xf32>
    %100 = arith.addf %93, %99 : vector<8x128xf32>
    %101 = tpu.iota {dimensions = array<i32: 0>} : vector<8x128xi32>
    %102 = vector.broadcast %72 : vector<1x128xi32> to vector<8x128xi32>
    %103 = arith.cmpi eq, %101, %102 : vector<8x128xi32>
    %cst_27 = arith.constant 1.000000e+00 : f32
    %104 = vector.broadcast %cst_27 : f32 to vector<1x128xf32>
    %105 = arith.subf %104, %12 : vector<1x128xf32>
    %cst_28 = arith.constant 0.000000e+00 : f32
    %106 = vector.shape_cast %105 : vector<1x128xf32> to vector<1x128xf32>
    %107 = vector.broadcast %106 : vector<1x128xf32> to vector<8x128xf32>
    %108 = vector.broadcast %cst_28 : f32 to vector<8x128xf32>
    %109 = arith.select %103, %107, %108 : vector<8x128xi1>, vector<8x128xf32>
    %110 = vector.broadcast %84 : vector<1x128xi32> to vector<8x128xi32>
    %111 = arith.cmpi eq, %101, %110 : vector<8x128xi32>
    %cst_29 = arith.constant 0.000000e+00 : f32
    %112 = vector.shape_cast %12 : vector<1x128xf32> to vector<1x128xf32>
    %113 = vector.broadcast %112 : vector<1x128xf32> to vector<8x128xf32>
    %114 = vector.broadcast %cst_29 : f32 to vector<8x128xf32>
    %115 = arith.select %111, %113, %114 : vector<8x128xi1>, vector<8x128xf32>
    %116 = arith.addf %109, %115 : vector<8x128xf32>
    %117 = vector.shape_cast %100 : vector<8x128xf32> to vector<8x1x128xf32>
    %118 = vector.shape_cast %116 : vector<8x128xf32> to vector<1x8x128xf32>
    %119 = vector.broadcast %117 : vector<8x1x128xf32> to vector<8x8x128xf32>
    %120 = vector.broadcast %118 : vector<1x8x128xf32> to vector<8x8x128xf32>
    %121 = arith.mulf %119, %120 : vector<8x8x128xf32>
    %122 = vector.shape_cast %121 : vector<8x8x128xf32> to vector<64x128xf32>
    %c0_30 = arith.constant 0 : index
    %c0_31 = arith.constant 0 : index
    %123 = vector.load %arg2[%c0_30, %c0_31] : memref<16x64xf32, #tpu.memory_space<vmem>>, vector<16x64xf32>
    %cst_32 = arith.constant dense<0.000000e+00> : vector<16x128xf32>
    %124 = tpu.matmul %123, %122, %cst_32 {dimension_numbers = #tpu.dot_dimension_numbers<[1], [0], [0], [1], [0, 0, 1, 1], [], []>, precision = #tpu.contract_precision<fp32>} : vector<16x64xf32>, vector<64x128xf32>, vector<16x128xf32> -> vector<16x128xf32>
    %125 = tpu.iota {dimensions = array<i32: 0>} : vector<8x128xi32>
    %126 = vector.broadcast %48 : vector<1x128xi32> to vector<8x128xi32>
    %127 = arith.cmpi eq, %125, %126 : vector<8x128xi32>
    %cst_33 = arith.constant 1.000000e+00 : f32
    %128 = vector.broadcast %cst_33 : f32 to vector<1x128xf32>
    %129 = arith.subf %128, %11 : vector<1x128xf32>
    %cst_34 = arith.constant 0.000000e+00 : f32
    %130 = vector.shape_cast %129 : vector<1x128xf32> to vector<1x128xf32>
    %131 = vector.broadcast %130 : vector<1x128xf32> to vector<8x128xf32>
    %132 = vector.broadcast %cst_34 : f32 to vector<8x128xf32>
    %133 = arith.select %127, %131, %132 : vector<8x128xi1>, vector<8x128xf32>
    %134 = vector.broadcast %60 : vector<1x128xi32> to vector<8x128xi32>
    %135 = arith.cmpi eq, %125, %134 : vector<8x128xi32>
    %cst_35 = arith.constant 0.000000e+00 : f32
    %136 = vector.shape_cast %11 : vector<1x128xf32> to vector<1x128xf32>
    %137 = vector.broadcast %136 : vector<1x128xf32> to vector<8x128xf32>
    %138 = vector.broadcast %cst_35 : f32 to vector<8x128xf32>
    %139 = arith.select %135, %137, %138 : vector<8x128xi1>, vector<8x128xf32>
    %140 = arith.addf %133, %139 : vector<8x128xf32>
    %141 = vector.shape_cast %124 : vector<16x128xf32> to vector<2x8x128xf32>
    %142 = vector.shape_cast %140 : vector<8x128xf32> to vector<1x8x128xf32>
    %143 = vector.broadcast %142 : vector<1x8x128xf32> to vector<2x8x128xf32>
    %144 = arith.mulf %141, %143 : vector<2x8x128xf32>
    %cst_36 = arith.constant dense<0.000000e+00> : vector<2x128xf32>
    %145 = vector.multi_reduction <add>, %144, %cst_36 [1] : vector<2x8x128xf32> to vector<2x128xf32>
    %c0_37 = arith.constant 0 : index
    %c0_38 = arith.constant 0 : index
    %146 = vector.load %arg3[%c0_37, %c0_38] : memref<2x128xf32, #tpu.memory_space<vmem>>, vector<2x128xf32>
    tpu.vector_store %arg3[%c0_37, %c0_38], %145 {strides = array<i32>} : memref<2x128xf32, #tpu.memory_space<vmem>>, vector<2x128xf32>,
    return
  }
  func.func @transform_0(%arg0: i32) -> (i32, i32) {
    %c0_i32 = arith.constant 0 : i32
    %c0_i32_0 = arith.constant 0 : i32
    return %c0_i32, %arg0 : i32, i32
  }
  func.func @transform_1(%arg0: i32) -> (i32, i32) {
    %c0_i32 = arith.constant 0 : i32
    %c0_i32_0 = arith.constant 0 : i32
    %c0_i32_1 = arith.constant 0 : i32
    return %c0_i32, %c0_i32_0 : i32, i32
  }
  func.func @transform_2(%arg0: i32) -> (i32, i32) {
    %c0_i32 = arith.constant 0 : i32
    %c0_i32_0 = arith.constant 0 : i32
    return %c0_i32, %arg0 : i32, i32
  }
}

</mosaic_0001>

<llo_original>
// kernel: tpu_custom_call.1
$region0: #{tpu_custom_call.1}
  #allocation0 [shape = 'u32[]', space=smem, size = 0x4, offset = 0x4, fixed_abs, tag = 'smem constant byte address 0x4 - core index']
  #allocation1 [shape = 'u32[144,128]{1,0:T(1,128)}', space=vmem, size = 0x12000, scoped, tag = 'internal scratch']
  %s0 = inlined_call_operand.hbm [shape: f32[3,128], index: 0, kind: input, shape index: {}]
  %s1 = inlined_call_operand.hbm [shape: f32[16,64], index: 1, kind: input, shape index: {}]
  %s2 = inlined_call_operand.hbm [shape: f32[2,128], index: 2, kind: output, shape index: {}]
  %s3 = sld [smem:[#allocation0]]
  $region26: #{tpu_custom_call.1} parent=0
    _
  %s5 = ssub.s32 1, %s3
  %s6 = scalar_select 0, %s5, %s3
  $region1: #{tpu_custom_call.1} parent=0
    #allocation2 [shape = 'u8[2048]{0}', space=vmem, size = 0x800, scoped, tag = 'input window, operand 0, single buffered']
    #allocation3 [shape = 's32[1]{0}', space=sflag, size = 0x4, scoped, tag = 'scoped memory for tpu_custom_call.1']
    #allocation4 [shape = 's32[1]{0}', space=sflag, size = 0x4, scoped, tag = 'scoped memory for tpu_custom_call.1']
    #allocation5 [shape = 'u8[8192]{0}', space=vmem, size = 0x2000, scoped, tag = 'input window, operand 1, single buffered']
    #allocation6 [shape = 's32[1]{0}', space=sflag, size = 0x4, scoped, tag = 'scoped memory for tpu_custom_call.1']
    #allocation7 [shape = 'u8[1024]{0}', space=vmem, size = 0x400, scoped, tag = 'output window, operand 0, single buffered']
    %7 = vsyncpa [#allocation3], 0
    %8 = vsyncpa [#allocation6], 0
    %9 = vsyncpa [#allocation4], 0
    // Predicated region
    $region2: #{tpu_custom_call.1} parent=1 // pred_check
      _
    $region3: #{tpu_custom_call.1} parent=1 // pred_check_branch
      %11 = sbr.rel (0) target = $region5
    $region4: #{tpu_custom_call.1} parent=1 // pred_region
      %s13 = ssub.s32 64, 64
      %14 = vsyncadd [#allocation3], %s13
      %s16 = sshll.u32 [#allocation2], 4
      %s17 = int_to_ptr.vmem [resolvable:$true] %s16
      %19 = dma.hbm_to_vmem [thread:$0]  %s0, 64, %s17, [#allocation3]
    $region5: #{tpu_custom_call.1} parent=1 // pred_fallthru
      _
    // Predicated region
    $region6: #{tpu_custom_call.1} parent=1 // pred_check
      _
    $region7: #{tpu_custom_call.1} parent=1 // pred_check_branch
      %21 = sbr.rel (0) target = $region9
    $region8: #{tpu_custom_call.1} parent=1 // pred_region
      %s23 = ssub.s32 256, 256
      %24 = vsyncadd [#allocation6], %s23
      %s25 = sshll.u32 [#allocation5], 4
      %s26 = int_to_ptr.vmem [resolvable:$true] %s25
      %31 = dma.hbm_to_vmem [thread:$0]  %s1, 256, %s26, [#allocation6], 128, 128, 8
    $region9: #{tpu_custom_call.1} parent=1 // pred_fallthru
      _
    // Predicated region
    $region10: #{tpu_custom_call.1} parent=1 // pred_check
      _
    $region11: #{tpu_custom_call.1} parent=1 // pred_check_branch
      %33 = sbr.rel (0) target = $region13
    $region12: #{tpu_custom_call.1} parent=1 // pred_region
      %34 = dma.done [#allocation3], 64
    $region13: #{tpu_custom_call.1} parent=1 // pred_fallthru
      _
    // Predicated region
    $region14: #{tpu_custom_call.1} parent=1 // pred_check
      _
    $region15: #{tpu_custom_call.1} parent=1 // pred_check_branch
      %36 = sbr.rel (0) target = $region17
    $region16: #{tpu_custom_call.1} parent=1 // pred_region
      %37 = dma.done [#allocation6], 256
    $region17: #{tpu_custom_call.1} parent=1 // pred_fallthru
      _
    %v38 = vld [vmem:[#allocation2] sm:$0x7]
    %v39 = vfloor.f32 %v38
    %v40 = vceil.f32 %v38
    %v41 = vsub.f32 %v38, %v39
    %v42 = vrcp.pop 7.0
    %v43 = vmul.f32 %v39, %v42
    %v44 = vfloor.f32 %v43
    %v45 = vmul.f32 %v44, 7.0
    %v46 = vsub.f32 %v39, %v45
    %vm47 = vcmp.ge.f32.partialorder %v46, 7.0
    %v48 = vsub.f32 %v46, 7.0
    %v49 = vsel %vm47, %v48, %v46
    %v50 = vcvt.f32.s32.to.zero.pseudo %v49
    %v51 = vmul.f32 %v40, %v42
    %v52 = vfloor.f32 %v51
    %v53 = vmul.f32 %v52, 7.0
    %v54 = vsub.f32 %v40, %v53
    %vm55 = vcmp.ge.f32.partialorder %v54, 7.0
    %v56 = vsub.f32 %v54, 7.0
    %v57 = vsel %vm55, %v56, %v54
    %v58 = vcvt.f32.s32.to.zero.pseudo %v57
    %v59 = vlaneseq
    %v60 = vshrl.u32 %v59, 7
    %v61 = vlaneseq
    %v62 = vshrl.u32 %v61, 7
    %v63 = vsub.s32 0, %v62
    %v64 = vrot.slane %v50, %v63
    %vm65 = vcmp.eq.s32.totalorder %v60, %v64
    %v66 = vsub.f32 1.0, %v41
    %v67 = vlaneseq
    %v68 = vshrl.u32 %v67, 7
    %v69 = vsub.s32 0, %v68
    %v70 = vrot.slane %v66, %v69
    %v71 = vsel %vm65, %v70, 0.0
    %v72 = vlaneseq
    %v73 = vshrl.u32 %v72, 7
    %v74 = vsub.s32 0, %v73
    %v75 = vrot.slane %v58, %v74
    %vm76 = vcmp.eq.s32.totalorder %v60, %v75
    %v77 = vlaneseq
    %v78 = vshrl.u32 %v77, 7
    %v79 = vsub.s32 0, %v78
    %v80 = vrot.slane %v41, %v79
    %v81 = vsel %vm76, %v80, 0.0
    %v82 = vadd.f32 %v71, %v81
    %v83 = vlaneseq
    %v84 = vshrl.u32 %v83, 7
    %v85 = vsub.s32 2, %v84
    %v86 = vrot.slane %v50, %v85
    %vm87 = vcmp.eq.s32.totalorder %v60, %v86
    %v88 = vlaneseq
    %v89 = vshrl.u32 %v88, 7
    %v90 = vsub.s32 2, %v89
    %v91 = vrot.slane %v66, %v90
    %v92 = vsel %vm87, %v91, 0.0
    %v93 = vlaneseq
    %v94 = vshrl.u32 %v93, 7
    %v95 = vsub.s32 2, %v94
    %v96 = vrot.slane %v58, %v95
    %vm97 = vcmp.eq.s32.totalorder %v60, %v96
    %v98 = vlaneseq
    %v99 = vshrl.u32 %v98, 7
    %v100 = vsub.s32 2, %v99
    %v101 = vrot.slane %v41, %v100
    %v102 = vsel %vm97, %v101, 0.0
    %v103 = vadd.f32 %v92, %v102
    %v105 = vcombine.high %v82, %v82
    %v107 = vunpack.c.l.s4 1966171168
    %v108 = vunpack.c.0.s8 %v107
    %v109 = vlaneseq
    %v110 = vshrl.u32 %v109, 7
    %v111 = vsub.s32 %v108, %v110
    %v112 = vrot.slane %v82, %v111
    %v114 = vunpack.c.l.s4 1966171168
    %v115 = vunpack.c.0.s8 %v114
    %v116 = vlaneseq
    %v117 = vshrl.u32 %v116, 7
    %v118 = vsub.s32 %v115, %v117
    %v119 = vrot.slane %v105, %v118
    %v120 = vcombine.high %v112, %v112
    %v121 = vcombine.high %v119, %v119
    %v123 = vunpack.c.l.s4 1966171168
    %v124 = vunpack.c.0.s8 %v123
    %v125 = vlaneseq
    %v126 = vshrl.u32 %v125, 7
    %v127 = vsub.s32 %v124, %v126
    %v128 = vrot.slane %v112, %v127
    %v130 = vunpack.c.l.s4 1966171168
    %v131 = vunpack.c.0.s8 %v130
    %v132 = vlaneseq
    %v133 = vshrl.u32 %v132, 7
    %v134 = vsub.s32 %v131, %v133
    %v135 = vrot.slane %v119, %v134
    %v137 = vunpack.c.l.s4 1966171168
    %v138 = vunpack.c.0.s8 %v137
    %v139 = vlaneseq
    %v140 = vshrl.u32 %v139, 7
    %v141 = vsub.s32 %v138, %v140
    %v142 = vrot.slane %v120, %v141
    %v144 = vunpack.c.l.s4 1966171168
    %v145 = vunpack.c.0.s8 %v144
    %v146 = vlaneseq
    %v147 = vshrl.u32 %v146, 7
    %v148 = vsub.s32 %v145, %v147
    %v149 = vrot.slane %v121, %v148
    %v150 = vcombine.high %v128, %v128
    %v151 = vcombine.high %v135, %v135
    %v152 = vcombine.high %v142, %v142
    %v153 = vcombine.high %v149, %v149
    %v154 = vlaneseq
    %v155 = vshrl.u32 %v154, 7
    %v156 = vsub.s32 0, %v155
    %v157 = vrot.slane %v128, %v156
    %v158 = vlaneseq
    %v159 = vshrl.u32 %v158, 7
    %v160 = vsub.s32 0, %v159
    %v161 = vrot.slane %v142, %v160
    %v162 = vlaneseq
    %v163 = vshrl.u32 %v162, 7
    %v164 = vsub.s32 0, %v163
    %v165 = vrot.slane %v150, %v164
    %v166 = vlaneseq
    %v167 = vshrl.u32 %v166, 7
    %v168 = vsub.s32 0, %v167
    %v169 = vrot.slane %v152, %v168
    %v170 = vlaneseq
    %v171 = vshrl.u32 %v170, 7
    %v172 = vsub.s32 0, %v171
    %v173 = vrot.slane %v135, %v172
    %v174 = vlaneseq
    %v175 = vshrl.u32 %v174, 7
    %v176 = vsub.s32 0, %v175
    %v177 = vrot.slane %v149, %v176
    %v178 = vlaneseq
    %v179 = vshrl.u32 %v178, 7
    %v180 = vsub.s32 0, %v179
    %v181 = vrot.slane %v151, %v180
    %v182 = vlaneseq
    %v183 = vshrl.u32 %v182, 7
    %v184 = vsub.s32 0, %v183
    %v185 = vrot.slane %v153, %v184
    %v194 = vmul.f32 %v157, %v103
    %v195 = vmul.f32 %v161, %v103
    %v196 = vmul.f32 %v165, %v103
    %v197 = vmul.f32 %v169, %v103
    %v198 = vmul.f32 %v173, %v103
    %v199 = vmul.f32 %v177, %v103
    %v200 = vmul.f32 %v181, %v103
    %v201 = vmul.f32 %v185, %v103
    %v202 = vld [vmem:[#allocation5] sm:$0xff]
    %v203 = vld [vmem:[#allocation5 + $0x8] sm:$0xff]
    %vm204 = vcmask 523264
    %v206 = vsel %vm204, %v202, 0
    %v209 = vsel %vm204, %v203, 0
    %211 = vmatprep.subr.mxu0 0.0
    %212 = vmatpush1.msra.mxu0 0.0
    %213 = vmatprep.subr.mxu0 0.0
    %214 = vmatpush1.msra.mxu0 0.0
    %215 = vmatprep.subr.mxu0 0.0
    %216 = vmatpush1.msra.mxu0 0.0
    %217 = vmatprep.subr.mxu0 0.0
    %218 = vmatpush1.msra.mxu0 0.0
    %219 = vmatprep.subr.mxu0 0.0
    %220 = vmatpush1.msra.mxu0 0.0
    %221 = vmatprep.subr.mxu0 0.0
    %222 = vmatpush1.msra.mxu0 0.0
    %223 = vmatprep.subr.mxu0 0.0
    %224 = vmatpush1.msra.mxu0 0.0
    %225 = vmatprep.subr.mxu0 0.0
    %226 = vmatpush1.msra.mxu0 0.0
    %227 = vmatprep.subr.mxu0 0.0
    %v228 = vand.u32 %v201, 4294901760
    %229 = vmatpush1.msra.mxu0 %v228
    %230 = vmatprep.subr.mxu0 0.0
    %v231 = vand.u32 %v200, 4294901760
    %232 = vmatpush1.msra.mxu0 %v231
    %233 = vmatprep.subr.mxu0 0.0
    %v234 = vand.u32 %v199, 4294901760
    %235 = vmatpush1.msra.mxu0 %v234
    %236 = vmatprep.subr.mxu0 0.0
    %v237 = vand.u32 %v198, 4294901760
    %238 = vmatpush1.msra.mxu0 %v237
    %239 = vmatprep.subr.mxu0 0.0
    %v240 = vand.u32 %v197, 4294901760
    %241 = vmatpush1.msra.mxu0 %v240
    %242 = vmatprep.subr.mxu0 0.0
    %v243 = vand.u32 %v196, 4294901760
    %244 = vmatpush1.msra.mxu0 %v243
    %245 = vmatprep.subr.mxu0 0.0
    %v246 = vand.u32 %v195, 4294901760
    %247 = vmatpush1.msra.mxu0 %v246
    %248 = vmatprep.subr.mxu0 0.0
    %v249 = vand.u32 %v194, 4294901760
    %250 = vmatpush1.msra.mxu0 %v249
    %251 = vmatprep.subr.mxu0 0.0
    %252 = vmatpush2.msra.mxu0 0.0
    %253 = vmatprep.subr.mxu0 0.0
    %254 = vmatpush2.msra.mxu0 0.0
    %255 = vmatprep.subr.mxu0 0.0
    %256 = vmatpush2.msra.mxu0 0.0
    %257 = vmatprep.subr.mxu0 0.0
    %258 = vmatpush2.msra.mxu0 0.0
    %259 = vmatprep.subr.mxu0 0.0
    %260 = vmatpush2.msra.mxu0 0.0
    %261 = vmatprep.subr.mxu0 0.0
    %262 = vmatpush2.msra.mxu0 0.0
    %263 = vmatprep.subr.mxu0 0.0
    %264 = vmatpush2.msra.mxu0 0.0
    %265 = vmatprep.subr.mxu0 0.0
    %266 = vmatpush2.msra.mxu0 0.0
    %267 = vmatprep.subr.mxu0 0.0
    %268 = vmatpush2.msra.mxu0 0.0
    %269 = vmatprep.subr.mxu0 0.0
    %270 = vmatpush2.msra.mxu0 0.0
    %271 = vmatprep.subr.mxu0 0.0
    %272 = vmatpush2.msra.mxu0 0.0
    %273 = vmatprep.subr.mxu0 0.0
    %274 = vmatpush2.msra.mxu0 0.0
    %275 = vmatprep.subr.mxu0 0.0
    %276 = vmatpush2.msra.mxu0 0.0
    %277 = vmatprep.subr.mxu0 0.0
    %278 = vmatpush2.msra.mxu0 0.0
    %279 = vmatprep.subr.mxu0 0.0
    %280 = vmatpush2.msra.mxu0 0.0
    %281 = vmatprep.subr.mxu0 0.0
    %282 = vmatpush2.msra.mxu0 0.0
    %283 = vmatprep.mubr.f32.mxu0 0.0
    %v284 = vand.u32 %v206, 4294901760
    %v285 = vsub.f32 %v206, %v284
    %v286 = vand.u32 %v285, 4294901760
    %v287 = vsub.f32 %v285, %v286
    %v288 = vand.u32 %v287, 4294901760
    %289 = vmatmul.mubr.f32.gmra.mxu0 %v288
    %v290 = vpop.f32.mrf.mxu0
    %v291 = vadd.f32 0.0, %v290
    %v292 = vpop.f32.mrf.mxu0
    %293 = vmatprep.mubr.f32.mxu0 0.0
    %v294 = vand.u32 %v209, 4294901760
    %v295 = vsub.f32 %v209, %v294
    %v296 = vand.u32 %v295, 4294901760
    %v297 = vsub.f32 %v295, %v296
    %v298 = vand.u32 %v297, 4294901760
    %299 = vmatmul.mubr.f32.gmra.mxu0 %v298
    %v300 = vpop.f32.mrf.mxu0
    %v301 = vadd.f32 0.0, %v300
    %v302 = vpop.f32.mrf.mxu0
    %303 = vdwg.mxu0
    %304 = vmatprep.subr.mxu0 0.0
    %305 = vmatpush1.msra.mxu0 0.0
    %306 = vmatprep.subr.mxu0 0.0
    %307 = vmatpush1.msra.mxu0 0.0
    %308 = vmatprep.subr.mxu0 0.0
    %309 = vmatpush1.msra.mxu0 0.0
    %310 = vmatprep.subr.mxu0 0.0
    %311 = vmatpush1.msra.mxu0 0.0
    %312 = vmatprep.subr.mxu0 0.0
    %313 = vmatpush1.msra.mxu0 0.0
    %314 = vmatprep.subr.mxu0 0.0
    %315 = vmatpush1.msra.mxu0 0.0
    %316 = vmatprep.subr.mxu0 0.0
    %317 = vmatpush1.msra.mxu0 0.0
    %318 = vmatprep.subr.mxu0 0.0
    %319 = vmatpush1.msra.mxu0 0.0
    %320 = vmatprep.subr.mxu0 0.0
    %v321 = vand.u32 %v201, 4294901760
    %v322 = vsub.f32 %v201, %v321
    %v323 = vand.u32 %v322, 4294901760
    %v324 = vsub.f32 %v322, %v323
    %v325 = vand.u32 %v324, 4294901760
    %326 = vmatpush1.msra.mxu0 %v325
    %327 = vmatprep.subr.mxu0 0.0
    %v328 = vand.u32 %v200, 4294901760
    %v329 = vsub.f32 %v200, %v328
    %v330 = vand.u32 %v329, 4294901760
    %v331 = vsub.f32 %v329, %v330
    %v332 = vand.u32 %v331, 4294901760
    %333 = vmatpush1.msra.mxu0 %v332
    %334 = vmatprep.subr.mxu0 0.0
    %v335 = vand.u32 %v199, 4294901760
    %v336 = vsub.f32 %v199, %v335
    %v337 = vand.u32 %v336, 4294901760
    %v338 = vsub.f32 %v336, %v337
    %v339 = vand.u32 %v338, 4294901760
    %340 = vmatpush1.msra.mxu0 %v339
    %341 = vmatprep.subr.mxu0 0.0
    %v342 = vand.u32 %v198, 4294901760
    %v343 = vsub.f32 %v198, %v342
    %v344 = vand.u32 %v343, 4294901760
    %v345 = vsub.f32 %v343, %v344
    %v346 = vand.u32 %v345, 4294901760
    %347 = vmatpush1.msra.mxu0 %v346
    %348 = vmatprep.subr.mxu0 0.0
    %v349 = vand.u32 %v197, 4294901760
    %v350 = vsub.f32 %v197, %v349
    %v351 = vand.u32 %v350, 4294901760
    %v352 = vsub.f32 %v350, %v351
    %v353 = vand.u32 %v352, 4294901760
    %354 = vmatpush1.msra.mxu0 %v353
    %355 = vmatprep.subr.mxu0 0.0
    %v356 = vand.u32 %v196, 4294901760
    %v357 = vsub.f32 %v196, %v356
    %v358 = vand.u32 %v357, 4294901760
    %v359 = vsub.f32 %v357, %v358
    %v360 = vand.u32 %v359, 4294901760
    %361 = vmatpush1.msra.mxu0 %v360
    %362 = vmatprep.subr.mxu0 0.0
    %v363 = vand.u32 %v195, 4294901760
    %v364 = vsub.f32 %v195, %v363
    %v365 = vand.u32 %v364, 4294901760
    %v366 = vsub.f32 %v364, %v365
    %v367 = vand.u32 %v366, 4294901760
    %368 = vmatpush1.msra.mxu0 %v367
    %369 = vmatprep.subr.mxu0 0.0
    %v370 = vand.u32 %v194, 4294901760
    %v371 = vsub.f32 %v194, %v370
    %v372 = vand.u32 %v371, 4294901760
    %v373 = vsub.f32 %v371, %v372
    %v374 = vand.u32 %v373, 4294901760
    %375 = vmatpush1.msra.mxu0 %v374
    %376 = vmatprep.subr.mxu0 0.0
    %377 = vmatpush2.msra.mxu0 0.0
    %378 = vmatprep.subr.mxu0 0.0
    %379 = vmatpush2.msra.mxu0 0.0
    %380 = vmatprep.subr.mxu0 0.0
    %381 = vmatpush2.msra.mxu0 0.0
    %382 = vmatprep.subr.mxu0 0.0
    %383 = vmatpush2.msra.mxu0 0.0
    %384 = vmatprep.subr.mxu0 0.0
    %385 = vmatpush2.msra.mxu0 0.0
    %386 = vmatprep.subr.mxu0 0.0
    %387 = vmatpush2.msra.mxu0 0.0
    %388 = vmatprep.subr.mxu0 0.0
    %389 = vmatpush2.msra.mxu0 0.0
    %390 = vmatprep.subr.mxu0 0.0
    %391 = vmatpush2.msra.mxu0 0.0
    %392 = vmatprep.subr.mxu0 0.0
    %393 = vmatpush2.msra.mxu0 0.0
    %394 = vmatprep.subr.mxu0 0.0
    %395 = vmatpush2.msra.mxu0 0.0
    %396 = vmatprep.subr.mxu0 0.0
    %397 = vmatpush2.msra.mxu0 0.0
    %398 = vmatprep.subr.mxu0 0.0
    %399 = vmatpush2.msra.mxu0 0.0
    %400 = vmatprep.subr.mxu0 0.0
    %401 = vmatpush2.msra.mxu0 0.0
    %402 = vmatprep.subr.mxu0 0.0
    %403 = vmatpush2.msra.mxu0 0.0
    %404 = vmatprep.subr.mxu0 0.0
    %405 = vmatpush2.msra.mxu0 0.0
    %406 = vmatprep.subr.mxu0 0.0
    %407 = vmatpush2.msra.mxu0 0.0
    %408 = vmatprep.mubr.f32.mxu0 0.0
    %v409 = vand.u32 %v206, 4294901760
    %410 = vmatmul.mubr.f32.gmra.mxu0 %v409
    %v411 = vpop.f32.mrf.mxu0
    %v412 = vadd.f32 %v291, %v411
    %v413 = vpop.f32.mrf.mxu0
    %414 = vmatprep.mubr.f32.mxu0 0.0
    %v415 = vand.u32 %v209, 4294901760
    %416 = vmatmul.mubr.f32.gmra.mxu0 %v415
    %v417 = vpop.f32.mrf.mxu0
    %v418 = vadd.f32 %v301, %v417
    %v419 = vpop.f32.mrf.mxu0
    %420 = vdwg.mxu0
    %421 = vmatprep.subr.mxu0 0.0
    %422 = vmatpush1.msra.mxu0 0.0
    %423 = vmatprep.subr.mxu0 0.0
    %424 = vmatpush1.msra.mxu0 0.0
    %425 = vmatprep.subr.mxu0 0.0
    %426 = vmatpush1.msra.mxu0 0.0
    %427 = vmatprep.subr.mxu0 0.0
    %428 = vmatpush1.msra.mxu0 0.0
    %429 = vmatprep.subr.mxu0 0.0
    %430 = vmatpush1.msra.mxu0 0.0
    %431 = vmatprep.subr.mxu0 0.0
    %432 = vmatpush1.msra.mxu0 0.0
    %433 = vmatprep.subr.mxu0 0.0
    %434 = vmatpush1.msra.mxu0 0.0
    %435 = vmatprep.subr.mxu0 0.0
    %436 = vmatpush1.msra.mxu0 0.0
    %437 = vmatprep.subr.mxu0 0.0
    %v438 = vand.u32 %v201, 4294901760
    %v439 = vsub.f32 %v201, %v438
    %440 = vmatpush1.msra.mxu0 %v439
    %441 = vmatprep.subr.mxu0 0.0
    %v442 = vand.u32 %v200, 4294901760
    %v443 = vsub.f32 %v200, %v442
    %444 = vmatpush1.msra.mxu0 %v443
    %445 = vmatprep.subr.mxu0 0.0
    %v446 = vand.u32 %v199, 4294901760
    %v447 = vsub.f32 %v199, %v446
    %448 = vmatpush1.msra.mxu0 %v447
    %449 = vmatprep.subr.mxu0 0.0
    %v450 = vand.u32 %v198, 4294901760
    %v451 = vsub.f32 %v198, %v450
    %452 = vmatpush1.msra.mxu0 %v451
    %453 = vmatprep.subr.mxu0 0.0
    %v454 = vand.u32 %v197, 4294901760
    %v455 = vsub.f32 %v197, %v454
    %456 = vmatpush1.msra.mxu0 %v455
    %457 = vmatprep.subr.mxu0 0.0
    %v458 = vand.u32 %v196, 4294901760
    %v459 = vsub.f32 %v196, %v458
    %460 = vmatpush1.msra.mxu0 %v459
    %461 = vmatprep.subr.mxu0 0.0
    %v462 = vand.u32 %v195, 4294901760
    %v463 = vsub.f32 %v195, %v462
    %464 = vmatpush1.msra.mxu0 %v463
    %465 = vmatprep.subr.mxu0 0.0
    %v466 = vand.u32 %v194, 4294901760
    %v467 = vsub.f32 %v194, %v466
    %468 = vmatpush1.msra.mxu0 %v467
    %469 = vmatprep.subr.mxu0 0.0
    %470 = vmatpush2.msra.mxu0 0.0
    %471 = vmatprep.subr.mxu0 0.0
    %472 = vmatpush2.msra.mxu0 0.0
    %473 = vmatprep.subr.mxu0 0.0
    %474 = vmatpush2.msra.mxu0 0.0
    %475 = vmatprep.subr.mxu0 0.0
    %476 = vmatpush2.msra.mxu0 0.0
    %477 = vmatprep.subr.mxu0 0.0
    %478 = vmatpush2.msra.mxu0 0.0
    %479 = vmatprep.subr.mxu0 0.0
    %480 = vmatpush2.msra.mxu0 0.0
    %481 = vmatprep.subr.mxu0 0.0
    %482 = vmatpush2.msra.mxu0 0.0
    %483 = vmatprep.subr.mxu0 0.0
    %484 = vmatpush2.msra.mxu0 0.0
    %485 = vmatprep.subr.mxu0 0.0
    %486 = vmatpush2.msra.mxu0 0.0
    %487 = vmatprep.subr.mxu0 0.0
    %488 = vmatpush2.msra.mxu0 0.0
    %489 = vmatprep.subr.mxu0 0.0
    %490 = vmatpush2.msra.mxu0 0.0
    %491 = vmatprep.subr.mxu0 0.0
    %492 = vmatpush2.msra.mxu0 0.0
    %493 = vmatprep.subr.mxu0 0.0
    %494 = vmatpush2.msra.mxu0 0.0
    %495 = vmatprep.subr.mxu0 0.0
    %496 = vmatpush2.msra.mxu0 0.0
    %497 = vmatprep.subr.mxu0 0.0
    %498 = vmatpush2.msra.mxu0 0.0
    %499 = vmatprep.subr.mxu0 0.0
    %500 = vmatpush2.msra.mxu0 0.0
    %501 = vmatprep.mubr.f32.mxu0 0.0
    %v502 = vand.u32 %v206, 4294901760
    %v503 = vsub.f32 %v206, %v502
    %504 = vmatmul.mubr.f32.gmra.mxu0 %v503
    %v505 = vpop.f32.mrf.mxu0
    %v506 = vadd.f32 %v412, %v505
    %v507 = vpop.f32.mrf.mxu0
    %508 = vmatprep.mubr.f32.mxu0 0.0
    %v509 = vand.u32 %v209, 4294901760
    %v510 = vsub.f32 %v209, %v509
    %511 = vmatmul.mubr.f32.gmra.mxu0 %v510
    %v512 = vpop.f32.mrf.mxu0
    %v513 = vadd.f32 %v418, %v512
    %v514 = vpop.f32.mrf.mxu0
    %515 = vdwg.mxu0
    %516 = vmatprep.subr.mxu0 0.0
    %517 = vmatpush1.msra.mxu0 0.0
    %518 = vmatprep.subr.mxu0 0.0
    %519 = vmatpush1.msra.mxu0 0.0
    %520 = vmatprep.subr.mxu0 0.0
    %521 = vmatpush1.msra.mxu0 0.0
    %522 = vmatprep.subr.mxu0 0.0
    %523 = vmatpush1.msra.mxu0 0.0
    %524 = vmatprep.subr.mxu0 0.0
    %525 = vmatpush1.msra.mxu0 0.0
    %526 = vmatprep.subr.mxu0 0.0
    %527 = vmatpush1.msra.mxu0 0.0
    %528 = vmatprep.subr.mxu0 0.0
    %529 = vmatpush1.msra.mxu0 0.0
    %530 = vmatprep.subr.mxu0 0.0
    %531 = vmatpush1.msra.mxu0 0.0
    %532 = vmatprep.subr.mxu0 0.0
    %v533 = vand.u32 %v201, 4294901760
    %534 = vmatpush1.msra.mxu0 %v533
    %535 = vmatprep.subr.mxu0 0.0
    %v536 = vand.u32 %v200, 4294901760
    %537 = vmatpush1.msra.mxu0 %v536
    %538 = vmatprep.subr.mxu0 0.0
    %v539 = vand.u32 %v199, 4294901760
    %540 = vmatpush1.msra.mxu0 %v539
    %541 = vmatprep.subr.mxu0 0.0
    %v542 = vand.u32 %v198, 4294901760
    %543 = vmatpush1.msra.mxu0 %v542
    %544 = vmatprep.subr.mxu0 0.0
    %v545 = vand.u32 %v197, 4294901760
    %546 = vmatpush1.msra.mxu0 %v545
    %547 = vmatprep.subr.mxu0 0.0
    %v548 = vand.u32 %v196, 4294901760
    %549 = vmatpush1.msra.mxu0 %v548
    %550 = vmatprep.subr.mxu0 0.0
    %v551 = vand.u32 %v195, 4294901760
    %552 = vmatpush1.msra.mxu0 %v551
    %553 = vmatprep.subr.mxu0 0.0
    %v554 = vand.u32 %v194, 4294901760
    %555 = vmatpush1.msra.mxu0 %v554
    %556 = vmatprep.subr.mxu0 0.0
    %557 = vmatpush2.msra.mxu0 0.0
    %558 = vmatprep.subr.mxu0 0.0
    %559 = vmatpush2.msra.mxu0 0.0
    %560 = vmatprep.subr.mxu0 0.0
    %561 = vmatpush2.msra.mxu0 0.0
    %562 = vmatprep.subr.mxu0 0.0
    %563 = vmatpush2.msra.mxu0 0.0
    %564 = vmatprep.subr.mxu0 0.0
    %565 = vmatpush2.msra.mxu0 0.0
    %566 = vmatprep.subr.mxu0 0.0
    %567 = vmatpush2.msra.mxu0 0.0
    %568 = vmatprep.subr.mxu0 0.0
    %569 = vmatpush2.msra.mxu0 0.0
    %570 = vmatprep.subr.mxu0 0.0
    %571 = vmatpush2.msra.mxu0 0.0
    %572 = vmatprep.subr.mxu0 0.0
    %573 = vmatpush2.msra.mxu0 0.0
    %574 = vmatprep.subr.mxu0 0.0
    %575 = vmatpush2.msra.mxu0 0.0
    %576 = vmatprep.subr.mxu0 0.0
    %577 = vmatpush2.msra.mxu0 0.0
    %578 = vmatprep.subr.mxu0 0.0
    %579 = vmatpush2.msra.mxu0 0.0
    %580 = vmatprep.subr.mxu0 0.0
    %581 = vmatpush2.msra.mxu0 0.0
    %582 = vmatprep.subr.mxu0 0.0
    %583 = vmatpush2.msra.mxu0 0.0
    %584 = vmatprep.subr.mxu0 0.0
    %585 = vmatpush2.msra.mxu0 0.0
    %586 = vmatprep.subr.mxu0 0.0
    %587 = vmatpush2.msra.mxu0 0.0
    %588 = vmatprep.mubr.f32.mxu0 0.0
    %v589 = vand.u32 %v206, 4294901760
    %v590 = vsub.f32 %v206, %v589
    %v591 = vand.u32 %v590, 4294901760
    %592 = vmatmul.mubr.f32.gmra.mxu0 %v591
    %v593 = vpop.f32.mrf.mxu0
    %v594 = vadd.f32 %v506, %v593
    %v595 = vpop.f32.mrf.mxu0
    %596 = vmatprep.mubr.f32.mxu0 0.0
    %v597 = vand.u32 %v209, 4294901760
    %v598 = vsub.f32 %v209, %v597
    %v599 = vand.u32 %v598, 4294901760
    %600 = vmatmul.mubr.f32.gmra.mxu0 %v599
    %v601 = vpop.f32.mrf.mxu0
    %v602 = vadd.f32 %v513, %v601
    %v603 = vpop.f32.mrf.mxu0
    %604 = vdwg.mxu0
    %605 = vmatprep.subr.mxu0 0.0
    %606 = vmatpush1.msra.mxu0 0.0
    %607 = vmatprep.subr.mxu0 0.0
    %608 = vmatpush1.msra.mxu0 0.0
    %609 = vmatprep.subr.mxu0 0.0
    %610 = vmatpush1.msra.mxu0 0.0
    %611 = vmatprep.subr.mxu0 0.0
    %612 = vmatpush1.msra.mxu0 0.0
    %613 = vmatprep.subr.mxu0 0.0
    %614 = vmatpush1.msra.mxu0 0.0
    %615 = vmatprep.subr.mxu0 0.0
    %616 = vmatpush1.msra.mxu0 0.0
    %617 = vmatprep.subr.mxu0 0.0
    %618 = vmatpush1.msra.mxu0 0.0
    %619 = vmatprep.subr.mxu0 0.0
    %620 = vmatpush1.msra.mxu0 0.0
    %621 = vmatprep.subr.mxu0 0.0
    %v622 = vand.u32 %v201, 4294901760
    %v623 = vsub.f32 %v201, %v622
    %v624 = vand.u32 %v623, 4294901760
    %625 = vmatpush1.msra.mxu0 %v624
    %626 = vmatprep.subr.mxu0 0.0
    %v627 = vand.u32 %v200, 4294901760
    %v628 = vsub.f32 %v200, %v627
    %v629 = vand.u32 %v628, 4294901760
    %630 = vmatpush1.msra.mxu0 %v629
    %631 = vmatprep.subr.mxu0 0.0
    %v632 = vand.u32 %v199, 4294901760
    %v633 = vsub.f32 %v199, %v632
    %v634 = vand.u32 %v633, 4294901760
    %635 = vmatpush1.msra.mxu0 %v634
    %636 = vmatprep.subr.mxu0 0.0
    %v637 = vand.u32 %v198, 4294901760
    %v638 = vsub.f32 %v198, %v637
    %v639 = vand.u32 %v638, 4294901760
    %640 = vmatpush1.msra.mxu0 %v639
    %641 = vmatprep.subr.mxu0 0.0
    %v642 = vand.u32 %v197, 4294901760
    %v643 = vsub.f32 %v197, %v642
    %v644 = vand.u32 %v643, 4294901760
    %645 = vmatpush1.msra.mxu0 %v644
    %646 = vmatprep.subr.mxu0 0.0
    %v647 = vand.u32 %v196, 4294901760
    %v648 = vsub.f32 %v196, %v647
    %v649 = vand.u32 %v648, 4294901760
    %650 = vmatpush1.msra.mxu0 %v649
    %651 = vmatprep.subr.mxu0 0.0
    %v652 = vand.u32 %v195, 4294901760
    %v653 = vsub.f32 %v195, %v652
    %v654 = vand.u32 %v653, 4294901760
    %655 = vmatpush1.msra.mxu0 %v654
    %656 = vmatprep.subr.mxu0 0.0
    %v657 = vand.u32 %v194, 4294901760
    %v658 = vsub.f32 %v194, %v657
    %v659 = vand.u32 %v658, 4294901760
    %660 = vmatpush1.msra.mxu0 %v659
    %661 = vmatprep.subr.mxu0 0.0
    %662 = vmatpush2.msra.mxu0 0.0
    %663 = vmatprep.subr.mxu0 0.0
    %664 = vmatpush2.msra.mxu0 0.0
    %665 = vmatprep.subr.mxu0 0.0
    %666 = vmatpush2.msra.mxu0 0.0
    %667 = vmatprep.subr.mxu0 0.0
    %668 = vmatpush2.msra.mxu0 0.0
    %669 = vmatprep.subr.mxu0 0.0
    %670 = vmatpush2.msra.mxu0 0.0
    %671 = vmatprep.subr.mxu0 0.0
    %672 = vmatpush2.msra.mxu0 0.0
    %673 = vmatprep.subr.mxu0 0.0
    %674 = vmatpush2.msra.mxu0 0.0
    %675 = vmatprep.subr.mxu0 0.0
    %676 = vmatpush2.msra.mxu0 0.0
    %677 = vmatprep.subr.mxu0 0.0
    %678 = vmatpush2.msra.mxu0 0.0
    %679 = vmatprep.subr.mxu0 0.0
    %680 = vmatpush2.msra.mxu0 0.0
    %681 = vmatprep.subr.mxu0 0.0
    %682 = vmatpush2.msra.mxu0 0.0
    %683 = vmatprep.subr.mxu0 0.0
    %684 = vmatpush2.msra.mxu0 0.0
    %685 = vmatprep.subr.mxu0 0.0
    %686 = vmatpush2.msra.mxu0 0.0
    %687 = vmatprep.subr.mxu0 0.0
    %688 = vmatpush2.msra.mxu0 0.0
    %689 = vmatprep.subr.mxu0 0.0
    %690 = vmatpush2.msra.mxu0 0.0
    %691 = vmatprep.subr.mxu0 0.0
    %692 = vmatpush2.msra.mxu0 0.0
    %693 = vmatprep.mubr.f32.mxu0 0.0
    %v694 = vand.u32 %v206, 4294901760
    %695 = vmatmul.mubr.f32.gmra.mxu0 %v694
    %v696 = vpop.f32.mrf.mxu0
    %v697 = vadd.f32 %v594, %v696
    %v698 = vpop.f32.mrf.mxu0
    %699 = vmatprep.mubr.f32.mxu0 0.0
    %v700 = vand.u32 %v209, 4294901760
    %701 = vmatmul.mubr.f32.gmra.mxu0 %v700
    %v702 = vpop.f32.mrf.mxu0
    %v703 = vadd.f32 %v602, %v702
    %v704 = vpop.f32.mrf.mxu0
    %705 = vdwg.mxu0
    %706 = vmatprep.subr.mxu0 0.0
    %707 = vmatpush1.msra.mxu0 0.0
    %708 = vmatprep.subr.mxu0 0.0
    %709 = vmatpush1.msra.mxu0 0.0
    %710 = vmatprep.subr.mxu0 0.0
    %711 = vmatpush1.msra.mxu0 0.0
    %712 = vmatprep.subr.mxu0 0.0
    %713 = vmatpush1.msra.mxu0 0.0
    %714 = vmatprep.subr.mxu0 0.0
    %715 = vmatpush1.msra.mxu0 0.0
    %716 = vmatprep.subr.mxu0 0.0
    %717 = vmatpush1.msra.mxu0 0.0
    %718 = vmatprep.subr.mxu0 0.0
    %719 = vmatpush1.msra.mxu0 0.0
    %720 = vmatprep.subr.mxu0 0.0
    %721 = vmatpush1.msra.mxu0 0.0
    %722 = vmatprep.subr.mxu0 0.0
    %v723 = vand.u32 %v201, 4294901760
    %724 = vmatpush1.msra.mxu0 %v723
    %725 = vmatprep.subr.mxu0 0.0
    %v726 = vand.u32 %v200, 4294901760
    %727 = vmatpush1.msra.mxu0 %v726
    %728 = vmatprep.subr.mxu0 0.0
    %v729 = vand.u32 %v199, 4294901760
    %730 = vmatpush1.msra.mxu0 %v729
    %731 = vmatprep.subr.mxu0 0.0
    %v732 = vand.u32 %v198, 4294901760
    %733 = vmatpush1.msra.mxu0 %v732
    %734 = vmatprep.subr.mxu0 0.0
    %v735 = vand.u32 %v197, 4294901760
    %736 = vmatpush1.msra.mxu0 %v735
    %737 = vmatprep.subr.mxu0 0.0
    %v738 = vand.u32 %v196, 4294901760
    %739 = vmatpush1.msra.mxu0 %v738
    %740 = vmatprep.subr.mxu0 0.0
    %v741 = vand.u32 %v195, 4294901760
    %742 = vmatpush1.msra.mxu0 %v741
    %743 = vmatprep.subr.mxu0 0.0
    %v744 = vand.u32 %v194, 4294901760
    %745 = vmatpush1.msra.mxu0 %v744
    %746 = vmatprep.subr.mxu0 0.0
    %747 = vmatpush2.msra.mxu0 0.0
    %748 = vmatprep.subr.mxu0 0.0
    %749 = vmatpush2.msra.mxu0 0.0
    %750 = vmatprep.subr.mxu0 0.0
    %751 = vmatpush2.msra.mxu0 0.0
    %752 = vmatprep.subr.mxu0 0.0
    %753 = vmatpush2.msra.mxu0 0.0
    %754 = vmatprep.subr.mxu0 0.0
    %755 = vmatpush2.msra.mxu0 0.0
    %756 = vmatprep.subr.mxu0 0.0
    %757 = vmatpush2.msra.mxu0 0.0
    %758 = vmatprep.subr.mxu0 0.0
    %759 = vmatpush2.msra.mxu0 0.0
    %760 = vmatprep.subr.mxu0 0.0
    %761 = vmatpush2.msra.mxu0 0.0
    %762 = vmatprep.subr.mxu0 0.0
    %763 = vmatpush2.msra.mxu0 0.0
    %764 = vmatprep.subr.mxu0 0.0
    %765 = vmatpush2.msra.mxu0 0.0
    %766 = vmatprep.subr.mxu0 0.0
    %767 = vmatpush2.msra.mxu0 0.0
    %768 = vmatprep.subr.mxu0 0.0
    %769 = vmatpush2.msra.mxu0 0.0
    %770 = vmatprep.subr.mxu0 0.0
    %771 = vmatpush2.msra.mxu0 0.0
    %772 = vmatprep.subr.mxu0 0.0
    %773 = vmatpush2.msra.mxu0 0.0
    %774 = vmatprep.subr.mxu0 0.0
    %775 = vmatpush2.msra.mxu0 0.0
    %776 = vmatprep.subr.mxu0 0.0
    %777 = vmatpush2.msra.mxu0 0.0
    %778 = vmatprep.mubr.f32.mxu0 0.0
    %v779 = vand.u32 %v206, 4294901760
    %780 = vmatmul.mubr.f32.gmra.mxu0 %v779
    %v781 = vpop.f32.mrf.mxu0
    %v782 = vadd.f32 %v697, %v781
    %v783 = vpop.f32.mrf.mxu0
    %784 = vmatprep.mubr.f32.mxu0 0.0
    %v785 = vand.u32 %v209, 4294901760
    %786 = vmatmul.mubr.f32.gmra.mxu0 %v785
    %v787 = vpop.f32.mrf.mxu0
    %v788 = vadd.f32 %v703, %v787
    %v789 = vpop.f32.mrf.mxu0
    %790 = vdwg.mxu0
    %v791 = vlaneseq
    %v792 = vshrl.u32 %v791, 7
    %v793 = vsub.s32 1, %v792
    %v794 = vrot.slane %v50, %v793
    %vm795 = vcmp.eq.s32.totalorder %v60, %v794
    %v796 = vlaneseq
    %v797 = vshrl.u32 %v796, 7
    %v798 = vsub.s32 1, %v797
    %v799 = vrot.slane %v66, %v798
    %v800 = vsel %vm795, %v799, 0.0
    %v801 = vlaneseq
    %v802 = vshrl.u32 %v801, 7
    %v803 = vsub.s32 1, %v802
    %v804 = vrot.slane %v58, %v803
    %vm805 = vcmp.eq.s32.totalorder %v60, %v804
    %v806 = vlaneseq
    %v807 = vshrl.u32 %v806, 7
    %v808 = vsub.s32 1, %v807
    %v809 = vrot.slane %v41, %v808
    %v810 = vsel %vm805, %v809, 0.0
    %v811 = vadd.f32 %v800, %v810
    %v812 = vmul.f32 %v782, %v811
    %v813 = vmul.f32 %v788, %v811
    %v814 = vrot.slane %v812, 4
    %v815 = vadd.f32 %v812, %v814
    %v816 = vrot.slane %v815, 2
    %v817 = vadd.f32 %v815, %v816
    %v818 = vrot.slane %v817, 1
    %v819 = vadd.f32 %v817, %v818
    %v820 = vrot.slane %v813, 4
    %v821 = vadd.f32 %v813, %v820
    %v822 = vrot.slane %v821, 2
    %v823 = vadd.f32 %v821, %v822
    %v824 = vrot.slane %v823, 1
    %v825 = vadd.f32 %v823, %v824
    %vm828 = vcmask 1041409
    %v829 = vsel %vm828, %v825, %v819
    %831 = vst [vmem:[#allocation7] sm:$0x3] %v829
    // Predicated region
    $region18: #{tpu_custom_call.1} parent=1 // pred_check
      _
    $region19: #{tpu_custom_call.1} parent=1 // pred_check_branch
      %833 = sbr.rel (0) target = $region21
    $region20: #{tpu_custom_call.1} parent=1 // pred_region
      %s835 = ssub.s32 32, 32
      %836 = vsyncadd [#allocation4], %s835
      %s838 = sshll.u32 [#allocation7], 4
      %s839 = int_to_ptr.vmem [resolvable:$true] %s838
      %841 = dma.vmem_to_hbm [thread:$0]  %s839, 32, %s2, [#allocation4]
    $region21: #{tpu_custom_call.1} parent=1 // pred_fallthru
      _
    // Predicated region
    $region22: #{tpu_custom_call.1} parent=1 // pred_check
      _
    $region23: #{tpu_custom_call.1} parent=1 // pred_check_branch
      %843 = sbr.rel (0) target = $region25
    $region24: #{tpu_custom_call.1} parent=1 // pred_region
      %844 = dma.done [#allocation4], 32
    $region25: #{tpu_custom_call.1} parent=1 // pred_fallthru
      _
    %845 = vsyncpa [#allocation3], 1
    %846 = vsyncpa [#allocation6], 1
    %847 = vsyncpa [#allocation4], 1

</llo_original>
